<compile_context>
chip_gen: v5e
topology: v5e:2x2
jax: 0.10.0
libtpu: 0.0.40
codegen_flags: <defaults>
</compile_context>

<pallas_src>
import functools

import jax
import jax.numpy as jnp
from jax import lax
from jax.experimental import pallas as pl
from jax.experimental.pallas import tpu as pltpu

_LANES = 128
_SUBLANES = 8
_MAX_TILE_BYTES = 2 * 1024 * 1024   # per input per pipeline buffer
_MIN_PALLAS_ELEMS = 2048            # below this, a launch costs more than the math
_NUM_CORES = 2                      # v7x has 2 TCs; harmless (sequential) on v5e/v6e


def _elem_loss(p, g, loss, log):
    """Per-element loss in f32.  Matches torch: only pred is clamped before log."""
    p = p.astype(jnp.float32)
    g = g.astype(jnp.float32)
    if log:
        p = jnp.log(jnp.maximum(p, jnp.float32(1e-6)))
        g = jnp.log(g)                      # gt intentionally unclamped (as in torch)
    d = p - g
    return jnp.abs(d) if loss == "l1" else d * d


def _reference_loss(p, g, loss, log):
    return jnp.mean(_elem_loss(p, g, loss, log))


def _scale_loss_kernel(pred_ref, gt_ref, out_ref, acc_ref, *,
                       loss, log, tile_rows, tiles_per_core, valid_rows,
                       needs_mask):
    i = pl.program_id(1)

    @pl.when(i == 0)
    def _():
        acc_ref[...] = jnp.zeros_like(acc_ref)

    p = pred_ref[...].astype(jnp.float32)
    g = gt_ref[...].astype(jnp.float32)

    if needs_mask:
        # Rows past the valid range (ragged last tile / clamped surplus tile on
        # the second core) get identical safe inputs -> exactly 0 contribution.
        # Substitution happens BEFORE the log so no -inf/NaN can be produced.
        c = pl.program_id(0)
        row0 = (c * tiles_per_core + i) * tile_rows
        row_ids = row0 + lax.broadcasted_iota(jnp.int32, (tile_rows, _LANES), 0)
        valid = row_ids < valid_rows
        one = jnp.float32(1.0)
        p = jnp.where(valid, p, one)
        g = jnp.where(valid, g, one)

    val = _elem_loss(p, g, loss, log)

    # Vreg-shaped partial sum: pure VPU adds across the leading (tile) axis,
    # no cross-lane movement and no scalar dependency chain inside the loop.
    acc_ref[...] += val.reshape(tile_rows // _SUBLANES, _SUBLANES, _LANES).sum(axis=0)

    @pl.when(i == pl.num_programs(1) - 1)
    def _():
        out_ref[0] = acc_ref[...]


def scale_loss(pred_scale, gt_scale, loss="l2", log=False, *,
               force_pallas=False, max_tile_rows=None, num_cores=_NUM_CORES):
    """pred_scale: (B,), gt_scale: (B,) -> scalar float32 loss (mean over B)."""
    assert pred_scale.shape == gt_scale.shape and pred_scale.ndim == 1
    (b,) = pred_scale.shape

    aligned = (b // _LANES) * _LANES    # bulk handled by the kernel

    # Tiny-B fast path: the fastest kernel is no kernel.
    if aligned == 0 or (b < _MIN_PALLAS_ELEMS and not force_pallas):
        return _reference_loss(pred_scale, gt_scale, loss, log)

    rows = aligned // _LANES

    itemsize = max(jnp.dtype(pred_scale.dtype).itemsize,
                   jnp.dtype(gt_scale.dtype).itemsize)
    cap_rows = _MAX_TILE_BYTES // (_LANES * itemsize)
    if max_tile_rows is not None:
        cap_rows = max_tile_rows
    assert cap_rows % _SUBLANES == 0 and cap_rows > 0
    rows_rounded = ((rows + _SUBLANES - 1) // _SUBLANES) * _SUBLANES
    tile_rows = min(cap_rows, rows_rounded)

    n_tiles = pl.cdiv(rows, tile_rows)
    tiles_per_core = pl.cdiv(n_tiles, num_cores)
    needs_mask = (rows % tile_rows != 0) or (num_cores * tiles_per_core != n_tiles)

    # Zero-copy 2-D lane/sublane-dense view of the 128-aligned prefix (the
    # slice is a no-op and the reshape a bitcast when B % 128 == 0).
    pred2d = pred_scale[:aligned].reshape(rows, _LANES)
    gt2d = gt_scale[:aligned].reshape(rows, _LANES)

    kernel = functools.partial(
        _scale_loss_kernel, loss=loss, log=log, tile_rows=tile_rows,
        tiles_per_core=tiles_per_core, valid_rows=rows, needs_mask=needs_mask)

    last_tile = n_tiles - 1

    def in_map(c, i):
        # Clamp so a surplus tile on the last core re-reads a valid tile
        # (its rows are fully masked out inside the kernel).
        return (jnp.minimum(c * tiles_per_core + i, last_tile), 0)

    partials = pl.pallas_call(
        kernel,
        out_shape=jax.ShapeDtypeStruct((num_cores, _SUBLANES, _LANES), jnp.float32),
        grid=(num_cores, tiles_per_core),
        in_specs=[
            pl.BlockSpec((tile_rows, _LANES), in_map),
            pl.BlockSpec((tile_rows, _LANES), in_map),
        ],
        out_specs=pl.BlockSpec((1, _SUBLANES, _LANES), lambda c, i: (c, 0, 0)),
        scratch_shapes=[pltpu.VMEM((_SUBLANES, _LANES), jnp.float32)],
        compiler_params=pltpu.CompilerParams(
            dimension_semantics=("parallel", "arbitrary")),
    )(pred2d, gt2d)

    total = jnp.sum(partials)

    # <128-element tail handled in plain JAX (negligible HBM traffic).
    if aligned < b:
        total = total + jnp.sum(
            _elem_loss(pred_scale[aligned:], gt_scale[aligned:], loss, log))

    # TODO(synk): torch's `assert not torch.isnan(loss)` has no trace-time
    # equivalent under jit; NaN checking is left to the caller.
    return total * jnp.float32(1.0 / b)


if __name__ == "__main__":
    key = jax.random.PRNGKey(0)
    k1, k2, k3, k4, k5, k6 = jax.random.split(key, 6)

    ok = True

    def _check(out, ref, rtol=1e-5, atol=1e-6):
        out = jax.block_until_ready(out)
        good = bool(jnp.allclose(out, ref, rtol=rtol, atol=atol))
        good &= not bool(jnp.isnan(out))
        return good

    # 1) Module-natural tiny shape (B=8): plain-JAX fast path.
    B_small = 8
    pred_s = jax.random.uniform(k1, (B_small,), jnp.float32, minval=0.1, maxval=2.0)
    gt_s = jax.random.uniform(k2, (B_small,), jnp.float32, minval=0.1, maxval=2.0)
    for loss_type in ("l2", "l1"):
        for use_log in (False, True):
            out_s = scale_loss(pred_s, gt_s, loss=loss_type, log=use_log)
            ok &= _check(out_s, _reference_loss(pred_s, gt_s, loss_type, use_log))

    # 2) Ragged shape (B=3000): 128-aligned bulk through the kernel with a
    #    multi-step grid + in-kernel row masking, 56-element tail in plain JAX.
    B_rag = 3000
    pred_r = jax.random.uniform(k3, (B_rag,), jnp.float32, minval=0.1, maxval=2.0)
    gt_r = jax.random.uniform(k4, (B_rag,), jnp.float32, minval=0.1, maxval=2.0)
    for loss_type in ("l2", "l1"):
        for use_log in (False, True):
            out_r = scale_loss(pred_r, gt_r, loss=loss_type, log=use_log,
                               max_tile_rows=8)
            ok &= _check(out_r, _reference_loss(pred_r, gt_r, loss_type, use_log))

    # 3) Aligned shape (B=4096): zero-copy reshape, no masking needed.
    B_al = 4096
    pred_a = jax.random.uniform(k5, (B_al,), jnp.float32, minval=0.1, maxval=2.0)
    gt_a = jax.random.uniform(k6, (B_al,), jnp.float32, minval=0.1, maxval=2.0)
    out_a = scale_loss(pred_a, gt_a, loss="l2", log=False)            # default tile
    ok &= _check(out_a, _reference_loss(pred_a, gt_a, "l2", False))
    out_a2 = scale_loss(pred_a, gt_a, loss="l1", log=True, max_tile_rows=16)
    ok &= _check(out_a2, _reference_loss(pred_a, gt_a, "l1", True))

    # 4) Forced Pallas at a small aligned size (exercises the clamped + fully
    #    masked surplus tile on the second core).
    pred_f = pred_a[:128]
    gt_f = gt_a[:128]
    out_f = scale_loss(pred_f, gt_f, loss="l2", log=True, force_pallas=True)
    ok &= _check(out_f, _reference_loss(pred_f, gt_f, "l2", True))

    # 5) bf16 inputs stay bf16 through the DMA (upcast in-kernel) -> half the
    #    HBM traffic.
    pred_bf = pred_r.astype(jnp.bfloat16)
    gt_bf = gt_r.astype(jnp.bfloat16)
    out_bf = scale_loss(pred_bf, gt_bf, loss="l2", log=False, max_tile_rows=8)
    ok &= _check(out_bf, _reference_loss(pred_bf, gt_bf, "l2", False), rtol=1e-4)

    if ok:
        print("KERNEL_OK")
</pallas_src>

<mosaic_0001>
module attributes {stable_mosaic.version = 11 : i64} {
  func.func @_scale_loss_kernel(%arg0: i32, %arg1: i32, %arg2: memref<8x128xf32, #tpu.memory_space<vmem>>, %arg3: memref<8x128xf32, #tpu.memory_space<vmem>>, %arg4: memref<1x8x128xf32, #tpu.memory_space<vmem>>, %arg5: memref<8x128xf32, #tpu.memory_space<vmem>>) attributes {dimension_semantics = [#tpu.dimension_semantics<parallel>, #tpu.dimension_semantics<arbitrary>], iteration_bounds = array<i64: 2, 2>, scalar_prefetch = 0 : i64, scratch_operands = 1 : i64, tpu.core_type = #tpu.core_type<tc>, window_params = [{transform_indices = @transform_0, window_bounds = array<i64: 8, 128>}, {transform_indices = @transform_1, window_bounds = array<i64: 8, 128>}, {transform_indices = @transform_2, window_bounds = array<i64: 1, 8, 128>}]} {
    %c0_i32 = arith.constant 0 : i32
    %0 = arith.cmpi eq, %arg1, %c0_i32 : i32
    %1 = arith.extui %0 : i1 to i32
    %c0_i32_0 = arith.constant 0 : i32
    %2 = arith.cmpi ne, %1, %c0_i32_0 : i32
    scf.if %2 {
      %cst_11 = arith.constant 0.000000e+00 : f32
      %27 = vector.broadcast %cst_11 : f32 to vector<8x128xf32>
      %c0_12 = arith.constant 0 : index
      %c0_13 = arith.constant 0 : index
      %28 = vector.load %arg5[%c0_12, %c0_13] : memref<8x128xf32, #tpu.memory_space<vmem>>, vector<8x128xf32>
      tpu.vector_store %arg5[%c0_12, %c0_13], %27 {strides = array<i32>} : memref<8x128xf32, #tpu.memory_space<vmem>>, vector<8x128xf32>,
    } else {
    }
    %c0 = arith.constant 0 : index
    %c0_1 = arith.constant 0 : index
    %3 = vector.load %arg2[%c0, %c0_1] : memref<8x128xf32, #tpu.memory_space<vmem>>, vector<8x128xf32>
    %c0_2 = arith.constant 0 : index
    %c0_3 = arith.constant 0 : index
    %4 = vector.load %arg3[%c0_2, %c0_3] : memref<8x128xf32, #tpu.memory_space<vmem>>, vector<8x128xf32>
    %c2_i32 = arith.constant 2 : i32
    %5 = arith.muli %arg0, %c2_i32 : i32
    %6 = arith.addi %5, %arg1 : i32
    %c8_i32 = arith.constant 8 : i32
    %7 = arith.muli %6, %c8_i32 : i32
    %8 = tpu.iota {dimensions = array<i32: 0>} : vector<8x128xi32>
    %9 = vector.broadcast %7 : i32 to vector<8x128xi32>
    %10 = arith.addi %9, %8 : vector<8x128xi32>
    %c23_i32 = arith.constant 23 : i32
    %11 = vector.broadcast %c23_i32 : i32 to vector<8x128xi32>
    %12 = arith.cmpi slt, %10, %11 : vector<8x128xi32>
    %cst = arith.constant 1.000000e+00 : f32
    %13 = vector.broadcast %cst : f32 to vector<8x128xf32>
    %14 = arith.select %12, %3, %13 : vector<8x128xi1>, vector<8x128xf32>
    %cst_4 = arith.constant 1.000000e+00 : f32
    %15 = vector.broadcast %cst_4 : f32 to vector<8x128xf32>
    %16 = arith.select %12, %4, %15 : vector<8x128xi1>, vector<8x128xf32>
    %17 = arith.subf %14, %16 : vector<8x128xf32>
    %18 = arith.mulf %17, %17 : vector<8x128xf32>
    %c0_5 = arith.constant 0 : index
    %c0_6 = arith.constant 0 : index
    %19 = vector.load %arg5[%c0_5, %c0_6] : memref<8x128xf32, #tpu.memory_space<vmem>>, vector<8x128xf32>
    %20 = vector.shape_cast %18 : vector<8x128xf32> to vector<1x8x128xf32>
    %cst_7 = arith.constant dense<0.000000e+00> : vector<8x128xf32>
    %21 = vector.multi_reduction <add>, %20, %cst_7 [0] : vector<1x8x128xf32> to vector<8x128xf32>
    %22 = arith.addf %19, %21 : vector<8x128xf32>
    %c0_8 = arith.constant 0 : index
    %c0_9 = arith.constant 0 : index
    %23 = vector.load %arg5[%c0_8, %c0_9] : memref<8x128xf32, #tpu.memory_space<vmem>>, vector<8x128xf32>
    tpu.vector_store %arg5[%c0_8, %c0_9], %22 {strides = array<i32>} : memref<8x128xf32, #tpu.memory_space<vmem>>, vector<8x128xf32>,
    %c1_i32 = arith.constant 1 : i32
    %24 = arith.cmpi eq, %arg1, %c1_i32 : i32
    %25 = arith.extui %24 : i1 to i32
    %c0_i32_10 = arith.constant 0 : i32
    %26 = arith.cmpi ne, %25, %c0_i32_10 : i32
    scf.if %26 {
      %c0_11 = arith.constant 0 : index
      %c0_12 = arith.constant 0 : index
      %27 = vector.load %arg5[%c0_11, %c0_12] : memref<8x128xf32, #tpu.memory_space<vmem>>, vector<8x128xf32>
      %c0_13 = arith.constant 0 : index
      %c0_14 = arith.constant 0 : index
      %c0_15 = arith.constant 0 : index
      %28 = vector.load %arg4[%c0_13, %c0_14, %c0_15] : memref<1x8x128xf32, #tpu.memory_space<vmem>>, vector<1x8x128xf32>
      %29 = vector.shape_cast %28 : vector<1x8x128xf32> to vector<8x128xf32>
      %30 = vector.shape_cast %27 : vector<8x128xf32> to vector<1x8x128xf32>
      tpu.vector_store %arg4[%c0_13, %c0_14, %c0_15], %30 {strides = array<i32>} : memref<1x8x128xf32, #tpu.memory_space<vmem>>, vector<1x8x128xf32>,
    } else {
    }
    return
  }
  func.func @transform_0(%arg0: i32, %arg1: i32) -> (i32, i32) {
    %c2_i32 = arith.constant 2 : i32
    %0 = arith.muli %arg0, %c2_i32 : i32
    %1 = arith.addi %0, %arg1 : i32
    %c2_i32_0 = arith.constant 2 : i32
    %2 = arith.minsi %1, %c2_i32_0 : i32
    %c0_i32 = arith.constant 0 : i32
    %c0_i32_1 = arith.constant 0 : i32
    return %2, %c0_i32 : i32, i32
  }
  func.func @transform_1(%arg0: i32, %arg1: i32) -> (i32, i32) {
    %c2_i32 = arith.constant 2 : i32
    %0 = arith.muli %arg0, %c2_i32 : i32
    %1 = arith.addi %0, %arg1 : i32
    %c2_i32_0 = arith.constant 2 : i32
    %2 = arith.minsi %1, %c2_i32_0 : i32
    %c0_i32 = arith.constant 0 : i32
    %c0_i32_1 = arith.constant 0 : i32
    return %2, %c0_i32 : i32, i32
  }
  func.func @transform_2(%arg0: i32, %arg1: i32) -> (i32, i32, i32) {
    %c0_i32 = arith.constant 0 : i32
    %c0_i32_0 = arith.constant 0 : i32
    %c0_i32_1 = arith.constant 0 : i32
    return %arg0, %c0_i32, %c0_i32_0 : i32, i32, i32
  }
}

</mosaic_0001>

<llo_original>
// kernel: tpu_custom_call.1
$region0: #{tpu_custom_call.1}
  #allocation0 [shape = 'u32[]', space=smem, size = 0x4, offset = 0x4, fixed_abs, tag = 'smem constant byte address 0x4 - core index']
  #allocation1 [shape = 'u32[72,128]{1,0:T(1,128)}', space=vmem, size = 0x9000, scoped, tag = 'internal scratch']
  #allocation2 [shape = 'f32[8,128]{1,0:T(8,128)}', space=vmem, size = 0x1000, scoped, tag = 'scratch operand']
  %s0 = inlined_call_operand.hbm [shape: f32[23,128], index: 0, kind: input, shape index: {}]
  %s1 = inlined_call_operand.hbm [shape: f32[23,128], index: 1, kind: input, shape index: {}]
  %s2 = inlined_call_operand.hbm [shape: f32[2,8,128], index: 2, kind: output, shape index: {}]
  %s3 = sld [smem:[#allocation0]]
  $region57: #{tpu_custom_call.1} parent=0
    _
  %s5 = ssub.s32 1, %s3
  %s6 = scalar_select 0, %s5, %s3
  $region1: #{tpu_custom_call.1} parent=0
    #allocation3 [shape = 'u8[8192]{0}', space=vmem, size = 0x2000, scoped, tag = 'input window, operand 0']
    #allocation4 [shape = 's32[2]{0}', space=sflag, size = 0x8, scoped, tag = 'scoped memory for tpu_custom_call.1']
    #allocation5 [shape = 's32[2]{0}', space=sflag, size = 0x8, scoped, tag = 'scoped memory for tpu_custom_call.1']
    #allocation6 [shape = 'u8[8192]{0}', space=vmem, size = 0x2000, scoped, tag = 'input window, operand 1']
    #allocation7 [shape = 's32[2]{0}', space=sflag, size = 0x8, scoped, tag = 'scoped memory for tpu_custom_call.1']
    #allocation8 [shape = 'u8[8192]{0}', space=vmem, size = 0x2000, scoped, tag = 'output window, operand 0']
    %7 = vsyncpa [#allocation4], 0
    %s8 = scalar_lea.sflag [#allocation4], 1
    %9 = vsyncpa %s8, 0
    %10 = vsyncpa [#allocation7], 0
    %s11 = scalar_lea.sflag [#allocation7], 1
    %12 = vsyncpa %s11, 0
    %13 = vsyncpa [#allocation5], 0
    %s14 = scalar_lea.sflag [#allocation5], 1
    %15 = vsyncpa %s14, 0
    loop: start=0, step=1, limit=6
    $region2: #{tpu_custom_call.1} parent=1 // loop_pre_header
      _
    $region3: #{tpu_custom_call.1} parent=1 // loop_header
      %s17 = sphi 0, %s21
      %p18 = scmp.ge.s32.totalorder %s17, 6
      %s24 = sphi 0, %s36
      %s25 = sphi 0, %s32
      %s26 = sphi 0, %s24
      %s27 = sphi 0, %s25
      %s28 = sphi 0, %s26
      %s29 = sphi 0, %s27
      %s47 = sphi 0, %s49
      %s50 = sphi 0, %s47
      %s51 = sphi 0, %s50
      %s67 = sphi 0, %s51
      %s81 = sphi 0, %s83
      %s84 = sphi 0, %s81
      %s85 = sphi 0, %s84
      %s101 = sphi 0, %s85
      %s107 = sphi 0, %s109
      %s110 = sphi 0, %s107
      %s111 = sphi 0, %s110
      %s127 = sphi 0, %s111
    $region4: #{tpu_custom_call.1} parent=1 // loop_header_branch
      %20 = sbr.rel (%p18) target = $region8
    $region5: #{tpu_custom_call.1} parent=1 // loop_body
      %s22 = ssub.s32 %s17, 1
      %s23 = ssub.s32 %s17, 2
      %s30 = sadd.s32 1, %s25
      %p31 = scmp.ge.s32.totalorder %s30, 2
      %s32 = scalar_select %p31, 0, %s30
      %s33 = sadd.s32 1, %s24
      %s34 = scalar_select %p31, %s33, %s24
      %p35 = scmp.ge.s32.totalorder %s34, 2
      %s36 = scalar_select %p35, 0, %s34
      %s37 = smul.u32 %s24, 2
      %s38 = sadd.s32 %s37, %s25
      %p39 = scmp.lt.s32.totalorder %s38, 2
      %s40 = scalar_select %p39, %s38, 2
      %s41 = smul.u32 %s36, 2
      %s42 = sadd.s32 %s41, %s32
      %p43 = scmp.lt.s32.totalorder %s42, 2
      %s44 = scalar_select %p43, %s42, 2
      %s45 = ssub.s32 %s40, %s44
      %p46 = scmp.eq.s32.totalorder %s45, 0
      %s48 = sadd.s32 %s47, 1
      %s49 = scalar_select %p46, %s47, %s48
      %p52 = pneg %p46
      %p53 = scmp.eq.s32.totalorder %s17, 3
      %p54 = por %p52, %p53
      %p55 = scmp.ne.s32.totalorder %s47, %s50
      %p56 = scmp.eq.s32.totalorder %s17, 0
      %p57 = por %p55, %p56
      %p58 = scmp.ne.s32.totalorder %s47, %s50
      %p59 = scmp.eq.s32.totalorder %s22, 3
      %p60 = por %p58, %p59
      %p61 = scmp.ne.s32.totalorder %s50, %s51
      %p62 = scmp.eq.s32.totalorder %s22, 0
      %p63 = por %p61, %p62
      %p64 = scmp.ne.s32.totalorder %s50, %s51
      %p65 = scmp.eq.s32.totalorder %s23, 3
      %p66 = por %p64, %p65
      %p68 = scmp.ne.s32.totalorder %s51, %s67
      %p69 = scmp.eq.s32.totalorder %s23, 0
      %p70 = por %p68, %p69
      %s71 = smul.u32 %s24, 2
      %s72 = sadd.s32 %s71, %s25
      %p73 = scmp.lt.s32.totalorder %s72, 2
      %s74 = scalar_select %p73, %s72, 2
      %s75 = smul.u32 %s36, 2
      %s76 = sadd.s32 %s75, %s32
      %p77 = scmp.lt.s32.totalorder %s76, 2
      %s78 = scalar_select %p77, %s76, 2
      %s79 = ssub.s32 %s74, %s78
      %p80 = scmp.eq.s32.totalorder %s79, 0
      %s82 = sadd.s32 %s81, 1
      %s83 = scalar_select %p80, %s81, %s82
      %p86 = pneg %p80
      %p87 = scmp.eq.s32.totalorder %s17, 3
      %p88 = por %p86, %p87
      %p89 = scmp.ne.s32.totalorder %s81, %s84
      %p90 = scmp.eq.s32.totalorder %s17, 0
      %p91 = por %p89, %p90
      %p92 = scmp.ne.s32.totalorder %s81, %s84
      %p93 = scmp.eq.s32.totalorder %s22, 3
      %p94 = por %p92, %p93
      %p95 = scmp.ne.s32.totalorder %s84, %s85
      %p96 = scmp.eq.s32.totalorder %s22, 0
      %p97 = por %p95, %p96
      %p98 = scmp.ne.s32.totalorder %s84, %s85
      %p99 = scmp.eq.s32.totalorder %s23, 3
      %p100 = por %p98, %p99
      %p102 = scmp.ne.s32.totalorder %s85, %s101
      %p103 = scmp.eq.s32.totalorder %s23, 0
      %p104 = por %p102, %p103
      %s105 = ssub.s32 %s24, %s36
      %p106 = scmp.eq.s32.totalorder %s105, 0
      %s108 = sadd.s32 %s107, 1
      %s109 = scalar_select %p106, %s107, %s108
      %p112 = pneg %p106
      %p113 = scmp.eq.s32.totalorder %s17, 3
      %p114 = por %p112, %p113
      %p115 = scmp.ne.s32.totalorder %s107, %s110
      %p116 = scmp.eq.s32.totalorder %s17, 0
      %p117 = por %p115, %p116
      %p118 = scmp.ne.s32.totalorder %s107, %s110
      %p119 = scmp.eq.s32.totalorder %s22, 3
      %p120 = por %p118, %p119
      %p121 = scmp.ne.s32.totalorder %s110, %s111
      %p122 = scmp.eq.s32.totalorder %s22, 0
      %p123 = por %p121, %p122
      %p124 = scmp.ne.s32.totalorder %s110, %s111
      %p125 = scmp.eq.s32.totalorder %s23, 3
      %p126 = por %p124, %p125
      %p128 = scmp.ne.s32.totalorder %s111, %s127
      %p129 = scmp.eq.s32.totalorder %s23, 0
      %p130 = por %p128, %p129
      %p131 = scmp.le.s32.totalorder 1, %s17
      %p132 = scmp.lt.s32.totalorder %s17, 5
      %p133 = pnand %p131, %p132
      %p134 = pneg %p133
      // Predicated region
      $region9: #{tpu_custom_call.1} parent=5 // pred_check
        _
      $region10: #{tpu_custom_call.1} parent=5 // pred_check_branch
        %136 = sbr.rel (%p133) target = $region12
      $region11: #{tpu_custom_call.1} parent=5 // pred_region
        %s137 = ssub.s32 %s17, 1
      $region12: #{tpu_custom_call.1} parent=5 // pred_fallthru
        _
      %p138 = scmp.lt.s32.totalorder %s17, 4
      // Predicated region
      $region13: #{tpu_custom_call.1} parent=5 // pred_check
        %p139 = pneg %p138
      $region14: #{tpu_custom_call.1} parent=5 // pred_check_branch
        %141 = sbr.rel (%p139) target = $region16
      $region15: #{tpu_custom_call.1} parent=5 // pred_region
        // Predicated region
        $region17: #{tpu_custom_call.1} parent=15 // pred_check
          %p142 = pneg %p57
        $region18: #{tpu_custom_call.1} parent=15 // pred_check_branch
          %144 = sbr.rel (%p142) target = $region20
        $region19: #{tpu_custom_call.1} parent=15 // pred_region
          %s145 = sand.u32 %s47, 1
          %s146 = scalar_lea.sflag [#allocation4], %s145
          %s147 = sand.u32 %s47, 1
          %s148 = smul.addr %s147, 8
          %s149 = scalar_lea.vmem [#allocation3], %s148
          %s150 = smul.u32 %s24, 2
          %s151 = sadd.s32 %s150, %s25
          %p152 = scmp.lt.s32.totalorder %s151, 2
          %s153 = scalar_select %p152, %s151, 2
          %155 = vsyncadd %s146, 0
          %s156 = smul.addr %s153, 8
          %s157 = scalar_lea.hbm %s0, %s156
          %s159 = sshll.u32 %s157, 4
          %s160 = int_to_ptr.hbm [resolvable:$true] %s159
          %s161 = sshll.u32 %s149, 4
          %s162 = int_to_ptr.vmem [resolvable:$true] %s161
          %164 = dma.hbm_to_vmem [thread:$0]  %s160, 128, %s162, %s146
        $region20: #{tpu_custom_call.1} parent=15 // pred_fallthru
          _
        // Predicated region
        $region21: #{tpu_custom_call.1} parent=15 // pred_check
          %p165 = pneg %p91
        $region22: #{tpu_custom_call.1} parent=15 // pred_check_branch
          %167 = sbr.rel (%p165) target = $region24
        $region23: #{tpu_custom_call.1} parent=15 // pred_region
          %s168 = sand.u32 %s81, 1
          %s169 = scalar_lea.sflag [#allocation7], %s168
          %s170 = sand.u32 %s81, 1
          %s171 = smul.addr %s170, 8
          %s172 = scalar_lea.vmem [#allocation6], %s171
          %s173 = smul.u32 %s24, 2
          %s174 = sadd.s32 %s173, %s25
          %p175 = scmp.lt.s32.totalorder %s174, 2
          %s176 = scalar_select %p175, %s174, 2
          %178 = vsyncadd %s169, 0
          %s179 = smul.addr %s176, 8
          %s180 = scalar_lea.hbm %s1, %s179
          %s182 = sshll.u32 %s180, 4
          %s183 = int_to_ptr.hbm [resolvable:$true] %s182
          %s184 = sshll.u32 %s172, 4
          %s185 = int_to_ptr.vmem [resolvable:$true] %s184
          %187 = dma.hbm_to_vmem [thread:$0]  %s183, 128, %s185, %s169
        $region24: #{tpu_custom_call.1} parent=15 // pred_fallthru
          _
      $region16: #{tpu_custom_call.1} parent=5 // pred_fallthru
        _
      %p188 = scmp.le.s32.totalorder 1, %s17
      %p189 = scmp.lt.s32.totalorder %s17, 5
      %p190 = pnand %p188, %p189
      %p191 = pneg %p190
      // Predicated region
      $region25: #{tpu_custom_call.1} parent=5 // pred_check
        _
      $region26: #{tpu_custom_call.1} parent=5 // pred_check_branch
        %193 = sbr.rel (%p190) target = $region28
      $region27: #{tpu_custom_call.1} parent=5 // pred_region
        %s194 = ssub.s32 %s17, 1
        %s195 = sand.u32 %s50, 1
        %s196 = scalar_lea.sflag [#allocation4], %s195
        %s197 = sand.u32 %s50, 1
        %s198 = smul.addr %s197, 8
        %s199 = scalar_lea.vmem [#allocation3], %s198
        // Predicated region
        $region29: #{tpu_custom_call.1} parent=27 // pred_check
          %p200 = pneg %p63
        $region30: #{tpu_custom_call.1} parent=27 // pred_check_branch
          %202 = sbr.rel (%p200) target = $region32
        $region31: #{tpu_custom_call.1} parent=27 // pred_region
          %204 = dma.done %s196, 128
        $region32: #{tpu_custom_call.1} parent=27 // pred_fallthru
          _
        %s205 = sand.u32 %s84, 1
        %s206 = scalar_lea.sflag [#allocation7], %s205
        %s207 = sand.u32 %s84, 1
        %s208 = smul.addr %s207, 8
        %s209 = scalar_lea.vmem [#allocation6], %s208
        // Predicated region
        $region33: #{tpu_custom_call.1} parent=27 // pred_check
          %p210 = pneg %p97
        $region34: #{tpu_custom_call.1} parent=27 // pred_check_branch
          %212 = sbr.rel (%p210) target = $region36
        $region35: #{tpu_custom_call.1} parent=27 // pred_region
          %214 = dma.done %s206, 128
        $region36: #{tpu_custom_call.1} parent=27 // pred_fallthru
          _
        %s215 = sand.u32 %s50, 1
        %s216 = scalar_lea.sflag [#allocation4], %s215
        %s217 = sand.u32 %s50, 1
        %s218 = smul.addr %s217, 8
        %s219 = scalar_lea.vmem [#allocation3], %s218
        %p220 = pneg %p63
        %p221 = pneg %p60
        %s222 = sand.u32 %s84, 1
        %s223 = scalar_lea.sflag [#allocation7], %s222
        %s224 = sand.u32 %s84, 1
        %s225 = smul.addr %s224, 8
        %s226 = scalar_lea.vmem [#allocation6], %s225
        %p227 = pneg %p97
        %p228 = pneg %p94
        %p229 = pneg %p123
        %p230 = pneg %p120
        %s231 = sand.u32 %s110, 1
        %s232 = scalar_lea.sflag [#allocation5], %s231
        %s233 = sand.u32 %s110, 1
        %s234 = smul.addr %s233, 8
        %s235 = scalar_lea.vmem [#allocation8], %s234
        %s236 = smul.u32 %s26, 2
        %s237 = sadd.s32 %s236, %s27
        %p238 = scmp.lt.s32.totalorder %s237, 2
        %s239 = scalar_select %p238, %s237, 2
        %s240 = smul.u32 %s26, 2
        %s241 = sadd.s32 %s240, %s27
        %p242 = scmp.lt.s32.totalorder %s241, 2
        %s243 = scalar_select %p242, %s241, 2
        %p244 = scmp.eq.s32.totalorder %s27, 0
        // Predicated region
        $region37: #{tpu_custom_call.1} parent=27 // pred_check
          %p245 = pneg %p244
        $region38: #{tpu_custom_call.1} parent=27 // pred_check_branch
          %247 = sbr.rel (%p245) target = $region40
        $region39: #{tpu_custom_call.1} parent=27 // pred_region
          %248 = vst [vmem:[#allocation2] sm:$0xff] 0.0
        $region40: #{tpu_custom_call.1} parent=27 // pred_fallthru
          _
        %v249 = vld [vmem:[%s199] sm:$0xff]
        %v250 = vld [vmem:[%s209] sm:$0xff]
        %s251 = smul.u32 %s26, 2
        %s252 = sadd.s32 %s251, %s27
        %s253 = smul.u32 %s252, 8
        %v254 = vlaneseq
        %v255 = vshrl.u32 %v254, 7
        %v256 = vstv %s253
        %v257 = vadd.s32 %v256, %v255
        %vm258 = vcmp.lt.s32.totalorder %v257, 23
        %v259 = vsel %vm258, %v249, 1.0
        %v260 = vsel %vm258, %v250, 1.0
        %v261 = vsub.f32 %v259, %v260
        %v262 = vmul.f32 %v261, %v261
        %v263 = vld [vmem:[#allocation2] sm:$0xff]
        %v264 = vadd.f32 %v262, 0.0
        %v265 = vadd.f32 %v263, %v264
        %266 = vst [vmem:[#allocation2] sm:$0xff] %v265
        %p267 = scmp.eq.s32.totalorder %s27, 1
        // Predicated region
        $region41: #{tpu_custom_call.1} parent=27 // pred_check
          %p268 = pneg %p267
        $region42: #{tpu_custom_call.1} parent=27 // pred_check_branch
          %270 = sbr.rel (%p268) target = $region44
        $region43: #{tpu_custom_call.1} parent=27 // pred_region
          %v271 = vld [vmem:[#allocation2] sm:$0xff]
          %272 = vst [vmem:[%s235] sm:$0xff] %v271
        $region44: #{tpu_custom_call.1} parent=27 // pred_fallthru
          _
        %s273 = sand.u32 %s110, 1
        %s274 = scalar_lea.sflag [#allocation5], %s273
        %s275 = sand.u32 %s110, 1
        %s276 = smul.addr %s275, 8
        %s277 = scalar_lea.vmem [#allocation8], %s276
        // Predicated region
        $region45: #{tpu_custom_call.1} parent=27 // pred_check
          %p278 = pneg %p120
        $region46: #{tpu_custom_call.1} parent=27 // pred_check_branch
          %280 = sbr.rel (%p278) target = $region48
        $region47: #{tpu_custom_call.1} parent=27 // pred_region
          %282 = vsyncadd %s274, 0
          %s283 = smul.addr %s26, 8
          %s284 = scalar_lea.hbm %s2, %s283
          %s286 = sshll.u32 %s277, 4
          %s287 = int_to_ptr.vmem [resolvable:$true] %s286
          %s288 = sshll.u32 %s284, 4
          %s289 = int_to_ptr.hbm [resolvable:$true] %s288
          %291 = dma.vmem_to_hbm [thread:$0]  %s287, 128, %s289, %s274
        $region48: #{tpu_custom_call.1} parent=27 // pred_fallthru
          _
      $region28: #{tpu_custom_call.1} parent=5 // pred_fallthru
        _
      %p292 = scmp.le.s32.totalorder 2, %s17
      // Predicated region
      $region49: #{tpu_custom_call.1} parent=5 // pred_check
        %p293 = pneg %p292
      $region50: #{tpu_custom_call.1} parent=5 // pred_check_branch
        %295 = sbr.rel (%p293) target = $region52
      $region51: #{tpu_custom_call.1} parent=5 // pred_region
        %s296 = ssub.s32 %s17, 2
        // Predicated region
        $region53: #{tpu_custom_call.1} parent=51 // pred_check
          %p297 = pneg %p126
        $region54: #{tpu_custom_call.1} parent=51 // pred_check_branch
          %299 = sbr.rel (%p297) target = $region56
        $region55: #{tpu_custom_call.1} parent=51 // pred_region
          %s300 = sand.u32 %s111, 1
          %s301 = scalar_lea.sflag [#allocation5], %s300
          %s302 = sand.u32 %s111, 1
          %s303 = smul.addr %s302, 8
          %s304 = scalar_lea.vmem [#allocation8], %s303
          %306 = dma.done %s301, 128
        $region56: #{tpu_custom_call.1} parent=51 // pred_fallthru
          _
      $region52: #{tpu_custom_call.1} parent=5 // pred_fallthru
        _
    $region6: #{tpu_custom_call.1} parent=1 // loop_footer
      %s21 = sadd.s32 1, %s17
    $region7: #{tpu_custom_call.1} parent=1 // loop_footer_branch
      %16 = sbr.rel target = $region3
    $region8: #{tpu_custom_call.1} parent=1 // loop_exit
      _
    %307 = vsyncpa [#allocation4], 1
    %s308 = scalar_lea.sflag [#allocation4], 1
    %309 = vsyncpa %s308, 1
    %310 = vsyncpa [#allocation7], 1
    %s311 = scalar_lea.sflag [#allocation7], 1
    %312 = vsyncpa %s311, 1
    %313 = vsyncpa [#allocation5], 1
    %s314 = scalar_lea.sflag [#allocation5], 1
    %315 = vsyncpa %s314, 1

</llo_original>
